<compile_context>
chip_gen: v6e
topology: v6e:2x2x1
jax: 0.10.0
libtpu: 0.0.40
codegen_flags: <defaults>
</compile_context>

<pallas_src>
import math
from functools import partial

import jax
import jax.numpy as jnp
from jax.experimental import pallas as pl
from jax.experimental.pallas import tpu as pltpu


# ----------------------------------------------------------------------------
# pe buffer construction (matches the PyTorch __init__ exactly)
# ----------------------------------------------------------------------------
def make_pe(d_model: int, max_len: int = 5000) -> jax.Array:
    position = jnp.arange(max_len, dtype=jnp.float32)[:, None]          # [max_len, 1]
    div_term = jnp.exp(
        jnp.arange(0, d_model, 2, dtype=jnp.float32)
        * (-math.log(10000.0) / d_model)
    )                                                                    # [d_model//2]
    pe = jnp.zeros((max_len, 1, d_model), dtype=jnp.float32)
    pe = pe.at[:, 0, 0::2].set(jnp.sin(position * div_term))
    pe = pe.at[:, 0, 1::2].set(jnp.cos(position * div_term))
    return pe


def make_pe2d(d_model: int, max_len: int = 5000, dtype=jnp.float32) -> jax.Array:
    """Pre-flattened / pre-cast [max_len, d_model] pe buffer (build once at init)."""
    return make_pe(d_model, max_len)[:, 0, :].astype(dtype)


# ----------------------------------------------------------------------------
# tile sizing: small HBM-roofline-friendly tiles, many grid steps
# ----------------------------------------------------------------------------
def _pick_seq_tile(S: int, B: int, D: int, itemsize: int,
                   *, target_tile_bytes: int = 2 * 1024 * 1024,
                   min_steps: int = 8) -> int:
    """Seq tile targeting ~2 MiB of x per block (roofline plateau is ~512-1024 rows),
    with >= `min_steps` grid steps when the sequence permits and (best effort) an even
    step count so v7x megacore gets balanced work."""
    row_bytes = B * D * itemsize
    ts = max(8, (target_tile_bytes // row_bytes // 8) * 8)
    if S >= min_steps * 8:
        ts = min(ts, max(8, (S // min_steps // 8) * 8))
    ts = min(ts, S)
    # best-effort even step count for 2-TC parts
    steps = pl.cdiv(S, ts)
    while ts > 8 and steps > 1 and steps % 2 == 1:
        ts -= 8
        steps = pl.cdiv(S, ts)
    return ts


# ----------------------------------------------------------------------------
# Pallas kernels
# ----------------------------------------------------------------------------
def _pe_add_kernel(x_ref, pe_ref, o_ref, *, batch: int, d_model: int):
    # x_ref/o_ref: (ts, B*D); pe_ref: (ts, D).  Static per-batch slices of the refs
    # replace the old lane-concat replication: no (ts, B*D) pe temporary, stores stay
    # full-width vst when d_model % 128 == 0.
    pe_t = pe_ref[...]
    for b in range(batch):
        sl = slice(b * d_model, (b + 1) * d_model)
        o_ref[:, sl] = (x_ref[:, sl] + pe_t).astype(o_ref.dtype)


def _pe_add_dropout_kernel(seed_ref, x_ref, pe_ref, o_ref,
                           *, p: float, batch: int, d_model: int):
    # Inverted dropout with keep prob (1-p).  Per-grid-step reseeding keeps the result
    # deterministic even when the seq grid axis is sharded across TensorCores.
    pltpu.prng_seed(seed_ref[0] + pl.program_id(0))
    threshold = jnp.uint32(min(int(p * 4294967296.0), 4294967295))
    scale = 1.0 / (1.0 - p)
    pe_t = pe_ref[...]
    for b in range(batch):
        sl = slice(b * d_model, (b + 1) * d_model)
        y = x_ref[:, sl] + pe_t                              # (ts, D)
        bits = pltpu.prng_random_bits(y.shape)               # bits per D-wide slice
        if bits.dtype != jnp.uint32:
            bits = pltpu.bitcast(bits, jnp.uint32)
        keep = bits >= threshold                             # P(keep) = 1 - p
        o_ref[:, sl] = jnp.where(keep, y * scale, 0.0).astype(o_ref.dtype)


# ----------------------------------------------------------------------------
# Wrapper
# ----------------------------------------------------------------------------
def positional_encoding(
    x: jax.Array,
    pe: jax.Array,
    *,
    dropout_p: float = 0.1,
    training: bool = False,
    seed: int = 0,
    donate_x: bool = False,
) -> jax.Array:
    """x: [S, B, D]; pe: [max_len, 1, D] or pre-flattened [max_len, D].
    Returns (x + pe[:S]) with optional inverted dropout."""
    S, B, D = x.shape

    # Glue (matches `self.pe[:X.size(0)]`).  Prefer passing a pre-cast [max_len, D]
    # buffer from make_pe2d so no per-call slice+convert pass over pe is emitted.
    pe_flat = pe if pe.ndim == 2 else pe[:, 0, :]
    pe2d = pe_flat[:S].astype(x.dtype)                       # [S, D]
    x2d = x.reshape(S, B * D)                                # lane-dense slab (no copy)

    if training and dropout_p >= 1.0:
        # torch.nn.Dropout(p=1.0) zeroes everything.
        return jnp.zeros_like(x)

    ts = _pick_seq_tile(S, B, D, jnp.dtype(x.dtype).itemsize)
    grid = (pl.cdiv(S, ts),)
    out_shape = jax.ShapeDtypeStruct((S, B * D), x.dtype)

    # Small tiles (~2 MiB) x double-buffering fit comfortably inside the default scoped
    # VMEM limit on v5e/v6e/v7x, so no explicit vmem_limit_bytes is needed.
    compiler_params = pltpu.CompilerParams(
        dimension_semantics=("parallel",),
    )

    if (not training) or dropout_p == 0.0:
        # Eval-mode dropout is the identity.
        out2d = pl.pallas_call(
            partial(_pe_add_kernel, batch=B, d_model=D),
            out_shape=out_shape,
            grid_spec=pltpu.PrefetchScalarGridSpec(
                num_scalar_prefetch=0,
                grid=grid,
                in_specs=[pl.BlockSpec((ts, B * D), lambda i: (i, 0)),
                          pl.BlockSpec((ts, D), lambda i: (i, 0))],
                out_specs=pl.BlockSpec((ts, B * D), lambda i: (i, 0)),
            ),
            compiler_params=compiler_params,
            input_output_aliases={0: 0} if donate_x else {},
        )(x2d, pe2d)
        return out2d.reshape(S, B, D)

    # Training mode: dropout mask generated in-kernel from the TPU hardware PRNG.
    # TODO(synk): TPU hardware PRNG stream is not bit-identical to torch.nn.Dropout's
    # RNG (statistically equivalent inverted dropout).
    seed_arr = jnp.array([seed], dtype=jnp.int32)
    out2d = pl.pallas_call(
        partial(_pe_add_dropout_kernel, p=float(dropout_p), batch=B, d_model=D),
        out_shape=out_shape,
        grid_spec=pltpu.PrefetchScalarGridSpec(
            num_scalar_prefetch=1,
            grid=grid,
            # index_maps receive the scalar-prefetch ref as a trailing positional arg
            in_specs=[pl.BlockSpec((ts, B * D), lambda i, seed_ref: (i, 0)),
                      pl.BlockSpec((ts, D), lambda i, seed_ref: (i, 0))],
            out_specs=pl.BlockSpec((ts, B * D), lambda i, seed_ref: (i, 0)),
        ),
        compiler_params=compiler_params,
        input_output_aliases={1: 0} if donate_x else {},
    )(seed_arr, x2d, pe2d)
    return out2d.reshape(S, B, D)


# ----------------------------------------------------------------------------
# Demo / self-check
# ----------------------------------------------------------------------------
if __name__ == "__main__":
    key = jax.random.PRNGKey(0)
    S, B, D = 8, 2, 128                     # seq_len, batch, d_model
    MAX_LEN = 64                            # small max_len for the demo buffer

    x = jax.random.normal(key, (S, B, D), dtype=jnp.float32)
    pe3d = make_pe(D, max_len=MAX_LEN)                      # [max_len, 1, D] buffer
    pe2d = make_pe2d(D, max_len=MAX_LEN, dtype=x.dtype)     # pre-cast, hoisted once
    ref = x + pe3d[:S]

    # --- eval-mode forward (dropout == identity) ---------------------------------
    out = jax.block_until_ready(
        positional_encoding(x, pe2d, dropout_p=0.1, training=False)
    )
    assert out.shape == (S, B, D) and out.dtype == x.dtype
    assert jnp.allclose(out, ref, atol=1e-6, rtol=1e-6)

    # --- training-mode forward (in-kernel HW PRNG dropout); TPU-only primitives ---
    if jax.default_backend() == "tpu":
        p = 0.5
        out_tr = jax.block_until_ready(
            positional_encoding(x, pe2d, dropout_p=p, training=True, seed=123)
        )
        scale = 1.0 / (1.0 - p)
        # every element must be either (x+pe)*scale (kept) or exactly 0 (dropped)
        is_kept = jnp.isclose(out_tr, ref * scale, atol=1e-5, rtol=1e-5)
        is_dropped = jnp.isclose(out_tr, 0.0, atol=1e-6)
        assert bool(jnp.all(is_kept | is_dropped))
        drop_frac = float(jnp.mean(is_dropped.astype(jnp.float32)))
        assert 0.15 < drop_frac < 0.85, f"implausible drop fraction {drop_frac}"

    print("KERNEL_OK")
</pallas_src>

<mosaic_0001>
module attributes {stable_mosaic.version = 11 : i64} {
  func.func @_pe_add_kernel(%arg0: i32, %arg1: memref<8x256xf32, #tpu.memory_space<vmem>>, %arg2: memref<8x128xf32, #tpu.memory_space<vmem>>, %arg3: memref<8x256xf32, #tpu.memory_space<vmem>>) attributes {dimension_semantics = [#tpu.dimension_semantics<parallel>], iteration_bounds = array<i64: 1>, scalar_prefetch = 0 : i64, scratch_operands = 0 : i64, tpu.core_type = #tpu.core_type<tc>, window_params = [{transform_indices = @transform_0, window_bounds = array<i64: 8, 256>}, {transform_indices = @transform_1, window_bounds = array<i64: 8, 128>}, {transform_indices = @transform_2, window_bounds = array<i64: 8, 256>}]} {
    %c0 = arith.constant 0 : index
    %c0_0 = arith.constant 0 : index
    %0 = vector.load %arg2[%c0, %c0_0] : memref<8x128xf32, #tpu.memory_space<vmem>>, vector<8x128xf32>
    %c0_1 = arith.constant 0 : index
    %c0_2 = arith.constant 0 : index
    %1 = vector.load %arg1[%c0_1, %c0_2] : memref<8x256xf32, #tpu.memory_space<vmem>>, vector<8x128xf32>
    %2 = arith.addf %1, %0 : vector<8x128xf32>
    %c0_3 = arith.constant 0 : index
    %c0_4 = arith.constant 0 : index
    %3 = vector.load %arg3[%c0_3, %c0_4] : memref<8x256xf32, #tpu.memory_space<vmem>>, vector<8x128xf32>
    tpu.vector_store %arg3[%c0_3, %c0_4], %2 {strides = array<i32>} : memref<8x256xf32, #tpu.memory_space<vmem>>, vector<8x128xf32>,
    %c0_5 = arith.constant 0 : index
    %c128 = arith.constant 128 : index
    %4 = vector.load %arg1[%c0_5, %c128] : memref<8x256xf32, #tpu.memory_space<vmem>>, vector<8x128xf32>
    %5 = arith.addf %4, %0 : vector<8x128xf32>
    %c0_6 = arith.constant 0 : index
    %c128_7 = arith.constant 128 : index
    %6 = vector.load %arg3[%c0_6, %c128_7] : memref<8x256xf32, #tpu.memory_space<vmem>>, vector<8x128xf32>
    tpu.vector_store %arg3[%c0_6, %c128_7], %5 {strides = array<i32>} : memref<8x256xf32, #tpu.memory_space<vmem>>, vector<8x128xf32>,
    return
  }
  func.func @transform_0(%arg0: i32) -> (i32, i32) {
    %c0_i32 = arith.constant 0 : i32
    %c0_i32_0 = arith.constant 0 : i32
    return %arg0, %c0_i32 : i32, i32
  }
  func.func @transform_1(%arg0: i32) -> (i32, i32) {
    %c0_i32 = arith.constant 0 : i32
    %c0_i32_0 = arith.constant 0 : i32
    return %arg0, %c0_i32 : i32, i32
  }
  func.func @transform_2(%arg0: i32) -> (i32, i32) {
    %c0_i32 = arith.constant 0 : i32
    %c0_i32_0 = arith.constant 0 : i32
    return %arg0, %c0_i32 : i32, i32
  }
}

</mosaic_0001>

<llo_original>
// kernel: tpu_custom_call.1
$region0: #{tpu_custom_call.1}
  #allocation0 [shape = 'u32[]', space=smem, size = 0x4, offset = 0x4, fixed_abs, tag = 'smem constant byte address 0x4 - core index']
  #allocation1 [shape = 'u32[144,128]{1,0:T(1,128)}', space=vmem, size = 0x12000, scoped, tag = 'internal scratch']
  %s0 = inlined_call_operand.hbm [shape: f32[8,256], index: 0, kind: input, shape index: {}]
  %s1 = inlined_call_operand.hbm [shape: f32[8,128], index: 1, kind: input, shape index: {}]
  %s2 = inlined_call_operand.hbm [shape: f32[8,256], index: 2, kind: output, shape index: {}]
  %s3 = sld [smem:[#allocation0]]
  $region26: #{tpu_custom_call.1} parent=0
    _
  %s5 = ssub.s32 1, %s3
  %s6 = scalar_select 0, %s5, %s3
  $region1: #{tpu_custom_call.1} parent=0
    #allocation2 [shape = 'u8[8192]{0}', space=vmem, size = 0x2000, scoped, tag = 'input window, operand 0, single buffered']
    #allocation3 [shape = 's32[1]{0}', space=sflag, size = 0x4, scoped, tag = 'scoped memory for tpu_custom_call.1']
    #allocation4 [shape = 's32[1]{0}', space=sflag, size = 0x4, scoped, tag = 'scoped memory for tpu_custom_call.1']
    #allocation5 [shape = 'u8[4096]{0}', space=vmem, size = 0x1000, scoped, tag = 'input window, operand 1, single buffered']
    #allocation6 [shape = 's32[1]{0}', space=sflag, size = 0x4, scoped, tag = 'scoped memory for tpu_custom_call.1']
    #allocation7 [shape = 'u8[8192]{0}', space=vmem, size = 0x2000, scoped, tag = 'output window, operand 0, single buffered']
    %7 = vsyncpa [#allocation3], 0
    %8 = vsyncpa [#allocation6], 0
    %9 = vsyncpa [#allocation4], 0
    // Predicated region
    $region2: #{tpu_custom_call.1} parent=1 // pred_check
      _
    $region3: #{tpu_custom_call.1} parent=1 // pred_check_branch
      %11 = sbr.rel (0) target = $region5
    $region4: #{tpu_custom_call.1} parent=1 // pred_region
      %s13 = ssub.s32 256, 256
      %14 = vsyncadd [#allocation3], %s13
      %s16 = sshll.u32 [#allocation2], 4
      %s17 = int_to_ptr.vmem [resolvable:$true] %s16
      %19 = dma.hbm_to_vmem [thread:$0]  %s0, 256, %s17, [#allocation3]
    $region5: #{tpu_custom_call.1} parent=1 // pred_fallthru
      _
    // Predicated region
    $region6: #{tpu_custom_call.1} parent=1 // pred_check
      _
    $region7: #{tpu_custom_call.1} parent=1 // pred_check_branch
      %21 = sbr.rel (0) target = $region9
    $region8: #{tpu_custom_call.1} parent=1 // pred_region
      %s23 = ssub.s32 128, 128
      %24 = vsyncadd [#allocation6], %s23
      %s26 = sshll.u32 [#allocation5], 4
      %s27 = int_to_ptr.vmem [resolvable:$true] %s26
      %29 = dma.hbm_to_vmem [thread:$0]  %s1, 128, %s27, [#allocation6]
    $region9: #{tpu_custom_call.1} parent=1 // pred_fallthru
      _
    // Predicated region
    $region10: #{tpu_custom_call.1} parent=1 // pred_check
      _
    $region11: #{tpu_custom_call.1} parent=1 // pred_check_branch
      %31 = sbr.rel (0) target = $region13
    $region12: #{tpu_custom_call.1} parent=1 // pred_region
      %32 = dma.done [#allocation3], 256
    $region13: #{tpu_custom_call.1} parent=1 // pred_fallthru
      _
    // Predicated region
    $region14: #{tpu_custom_call.1} parent=1 // pred_check
      _
    $region15: #{tpu_custom_call.1} parent=1 // pred_check_branch
      %34 = sbr.rel (0) target = $region17
    $region16: #{tpu_custom_call.1} parent=1 // pred_region
      %35 = dma.done [#allocation6], 128
    $region17: #{tpu_custom_call.1} parent=1 // pred_fallthru
      _
    %v36 = vld [vmem:[#allocation5] sm:$0xff]
    %v37 = vld [vmem:[#allocation2] sm:$0xff]
    %v38 = vadd.f32 %v37, %v36
    %39 = vst [vmem:[#allocation7] sm:$0xff] %v38
    %v40 = vld [vmem:[#allocation2 + $0x8] sm:$0xff]
    %v41 = vadd.f32 %v40, %v36
    %42 = vst [vmem:[#allocation7 + $0x8] sm:$0xff] %v41
    // Predicated region
    $region18: #{tpu_custom_call.1} parent=1 // pred_check
      _
    $region19: #{tpu_custom_call.1} parent=1 // pred_check_branch
      %44 = sbr.rel (0) target = $region21
    $region20: #{tpu_custom_call.1} parent=1 // pred_region
      %s46 = ssub.s32 256, 256
      %47 = vsyncadd [#allocation4], %s46
      %s49 = sshll.u32 [#allocation7], 4
      %s50 = int_to_ptr.vmem [resolvable:$true] %s49
      %52 = dma.vmem_to_hbm [thread:$0]  %s50, 256, %s2, [#allocation4]
    $region21: #{tpu_custom_call.1} parent=1 // pred_fallthru
      _
    // Predicated region
    $region22: #{tpu_custom_call.1} parent=1 // pred_check
      _
    $region23: #{tpu_custom_call.1} parent=1 // pred_check_branch
      %54 = sbr.rel (0) target = $region25
    $region24: #{tpu_custom_call.1} parent=1 // pred_region
      %55 = dma.done [#allocation4], 256
    $region25: #{tpu_custom_call.1} parent=1 // pred_fallthru
      _
    %56 = vsyncpa [#allocation3], 1
    %57 = vsyncpa [#allocation6], 1
    %58 = vsyncpa [#allocation4], 1

</llo_original>
